<compile_context>
chip_gen: v7x
topology: tpu7x:2x2x1
jax: 0.10.0
libtpu: 0.0.40
codegen_flags: <defaults>
</compile_context>

<pallas_src>
import math

import jax
import jax.numpy as jnp
from jax.experimental import pallas as pl
from jax.experimental.pallas import tpu as pltpu


def downsample_kernel(x_ref, w_ref, b_ref, o_ref):
    # x_ref: (TH, 2, Wout, 2*Cin)  rows = flattened (batch, out-row); dim1 = input-row parity
    #                               last dim = [even-w Cin | odd-w Cin]
    # w_ref: (2*Cin, Cout)          0.25 * [W; W]  (pool scale folded in)
    # b_ref: (1, Cout)              f32
    # o_ref: (TH*Wout, Cout)        flat, lane/sublane-dense output slab
    th, _, wout, k2 = x_ref.shape
    m = th * wout

    # Even / odd input rows of each 2x2 pooling window.  The reshape is a free
    # sublane-merge relabel when Wout % 8 == 0; otherwise Mosaic inserts a VMEM
    # copy, which is hidden under the HBM DMA of this memory-bound op.
    top = x_ref[:, 0, :, :].reshape(m, k2)
    bot = x_ref[:, 1, :, :].reshape(m, k2)

    w = w_ref[...]
    b = b_ref[...].astype(jnp.float32)            # (1, Cout), broadcast over M

    # Pool fused into the 1x1 conv: the horizontal (w) reduction and the 0.25 scale
    # live in the stacked weight, so the MXU does that reduction; one VPU add
    # combines the two row partials, one add applies the bias.
    y = (jnp.dot(top, w, preferred_element_type=jnp.float32)
         + jnp.dot(bot, w, preferred_element_type=jnp.float32)
         + b)

    o_ref[...] = y.astype(o_ref.dtype)


def _vmem_budget_bytes():
    """(pipeline-resident byte budget, scoped vmem limit) — generation aware."""
    cap = 64 << 20                                # conservative default (v7x: 64 MiB / TC)
    try:
        info = pltpu.get_tpu_info()
        cap = int(getattr(info, "vmem_capacity_bytes", 0)) or cap
    except Exception:
        pass
    cap = max(cap, 32 << 20)
    budget = int(cap * 0.50)                      # ~32 MiB on v7x, ~64 MiB on v5e/v6e
    limit = max(int(cap * 0.75), budget + (8 << 20))
    limit = min(limit, cap)                       # explicit scoped-VMEM limit
    return budget, limit


def _pick_row_tile(total_rows, w, c_in, c_out, itemsize, budget_bytes):
    """Pooled-output rows per grid step, sized from the real VMEM footprint:
    2 x (input block + output block) double-buffered + in-kernel temporaries."""
    w_out = w // 2
    row_in = 2 * w * c_in * itemsize              # (2, Wout, 2*Cin) input slab per output row
    row_out = w_out * c_out * itemsize            # output slab per output row
    row_tmp = row_in + w_out * c_out * 4          # top/bot copies (worst case) + f32 accumulator
    per_row = 2 * (row_in + row_out) + row_tmp
    fixed = 2 * c_in * c_out * itemsize + c_out * 4
    th = max(1, (budget_bytes - fixed) // per_row)
    # Keep >= 4 grid blocks when possible (v7x has 2 TensorCores; also keeps the
    # DMA/compute pipeline busy) ...
    th = min(th, max(1, pl.cdiv(total_rows, 4)))
    th = min(th, total_rows)
    if th < total_rows:
        # ... and keep TH*Wout a multiple of 8 sublanes so the flat output block is
        # dense (unmasked vst) and the in-kernel reshape stays a free relabel.
        align = 8 // math.gcd(w_out, 8)
        th = max(align, (th // align) * align)
        th = min(th, total_rows)
    return int(th)


def downsample_nhwc(x_nhwc, conv_w_oi, conv_b):
    """Production path: NHWC in, NHWC out (keep activations NHWC end-to-end).

    x_nhwc: (N, H, W, Cin); conv_w_oi: (Cout, Cin) 1x1-conv weight; conv_b: (Cout,).
    Returns (N, H/2, W/2, Cout).
    """
    n, h, w, c_in = x_nhwc.shape
    c_out = conv_w_oi.shape[0]
    # TODO(synk): odd spatial sizes (where ceil_mode / count_include_pad actually
    # matter) are not supported; this network only feeds even H/W here.
    assert h % 2 == 0 and w % 2 == 0, "even spatial dims assumed (ceil_mode no-op)"
    h_out, w_out = h // 2, w // 2
    rows = n * h_out                              # flattened (batch, out-row) axis
    total_m = rows * w_out

    # Free row-major relabel (no data movement): pair the two input rows of each
    # pooling window and pack even/odd input columns into the lane axis.
    x4 = x_nhwc.reshape(rows, 2, w_out, 2 * c_in)

    # Stacked weight with the 0.25 pool scale folded in (fold in f32, then cast to
    # the activation dtype — bf16 activations halve HBM traffic if provided).
    w_io = jnp.transpose(conv_w_oi, (1, 0)).astype(jnp.float32)      # (Cin, Cout)
    w2 = (jnp.concatenate([w_io, w_io], axis=0) * 0.25).astype(x_nhwc.dtype)
    b2 = conv_b.reshape(1, c_out).astype(jnp.float32)

    itemsize = x_nhwc.dtype.itemsize
    budget, vmem_limit = _vmem_budget_bytes()
    th = _pick_row_tile(rows, w, c_in, c_out, itemsize, budget)
    grid = (pl.cdiv(rows, th),)

    flops = 2 * 2 * total_m * (2 * c_in) * c_out               # two K=2*Cin matmuls
    bytes_accessed = int(n * h * w * c_in * itemsize
                         + total_m * c_out * itemsize
                         + w2.size * w2.dtype.itemsize + b2.size * b2.dtype.itemsize)
    cost = pl.CostEstimate(flops=flops, transcendentals=0,
                           bytes_accessed=bytes_accessed)

    out_flat = pl.pallas_call(
        downsample_kernel,
        out_shape=jax.ShapeDtypeStruct((total_m, c_out), x_nhwc.dtype),
        grid_spec=pltpu.PrefetchScalarGridSpec(
            num_scalar_prefetch=0,
            grid=grid,
            in_specs=[
                pl.BlockSpec((th, 2, w_out, 2 * c_in), lambda t: (t, 0, 0, 0)),
                pl.BlockSpec((2 * c_in, c_out), lambda t: (0, 0)),
                pl.BlockSpec((1, c_out), lambda t: (0, 0)),
            ],
            out_specs=pl.BlockSpec((th * w_out, c_out), lambda t: (t, 0)),
        ),
        compiler_params=pltpu.CompilerParams(
            dimension_semantics=("parallel",),
            vmem_limit_bytes=vmem_limit),
        cost_estimate=cost,
    )(x4, w2, b2)

    return out_flat.reshape(n, h_out, w_out, c_out)            # free relabel


def downsample_nchw(x_nchw, conv_w_oi, conv_b):
    """Drop-in adapter matching the PyTorch module's NCHW layout.

    The two transposes here are exactly the HBM traffic the review asks to remove —
    use `downsample_nhwc` (NHWC end-to-end) in a full port of the network; this
    adapter exists only for layout parity with isolated PyTorch checkpoints/tests.
    """
    out = downsample_nhwc(jnp.transpose(x_nchw, (0, 2, 3, 1)), conv_w_oi, conv_b)
    return jnp.transpose(out, (0, 3, 1, 2))


def _reference_nhwc(x_nhwc, conv_w_oi, conv_b):
    n, h, w, c = x_nhwc.shape
    pooled = x_nhwc.reshape(n, h // 2, 2, w // 2, 2, c).mean(axis=(2, 4))
    return jnp.einsum("nhwc,oc->nhwo", pooled, conv_w_oi) + conv_b


if __name__ == "__main__":
    key = jax.random.PRNGKey(0)
    k_x, k_w, k_b = jax.random.split(key, 3)

    N, C_IN, C_OUT, H, W = 2, 4, 8, 16, 16

    x_nhwc = jax.random.normal(k_x, (N, H, W, C_IN), dtype=jnp.float32)
    conv_w = jax.random.normal(k_w, (C_OUT, C_IN), dtype=jnp.float32) * 0.1
    conv_b = jax.random.normal(k_b, (C_OUT,), dtype=jnp.float32) * 0.01

    # Production (NHWC end-to-end) path: no transposes around the pallas_call.
    out = jax.block_until_ready(downsample_nhwc(x_nhwc, conv_w, conv_b))
    ref = _reference_nhwc(x_nhwc, conv_w, conv_b)
    assert out.shape == (N, H // 2, W // 2, C_OUT)
    assert jnp.allclose(out, ref, atol=1e-5, rtol=1e-5)

    # Drop-in NCHW parity with the PyTorch module layout (adapter path).
    x_nchw = jnp.transpose(x_nhwc, (0, 3, 1, 2))
    out_nchw = jax.block_until_ready(downsample_nchw(x_nchw, conv_w, conv_b))
    assert out_nchw.shape == (N, C_OUT, H // 2, W // 2)
    assert jnp.allclose(out_nchw, jnp.transpose(ref, (0, 3, 1, 2)), atol=1e-5, rtol=1e-5)

    print("KERNEL_OK")
</pallas_src>

<mosaic_0001>
module attributes {stable_mosaic.version = 11 : i64} {
  func.func @downsample_kernel(%arg0: i32, %arg1: memref<4x2x8x8xf32, #tpu.memory_space<vmem>>, %arg2: memref<8x8xf32, #tpu.memory_space<vmem>>, %arg3: memref<1x8xf32, #tpu.memory_space<vmem>>, %arg4: memref<32x8xf32, #tpu.memory_space<vmem>>) attributes {dimension_semantics = [#tpu.dimension_semantics<parallel>], iteration_bounds = array<i64: 4>, scalar_prefetch = 0 : i64, scratch_operands = 0 : i64, tpu.core_type = #tpu.core_type<tc>, window_params = [{transform_indices = @transform_0, window_bounds = array<i64: 4, 2, 8, 8>}, {pipeline_mode = #tpu.pipeline_mode<synchronous>, transform_indices = @transform_1, window_bounds = array<i64: 8, 8>}, {pipeline_mode = #tpu.pipeline_mode<synchronous>, transform_indices = @transform_2, window_bounds = array<i64: 1, 8>}, {transform_indices = @transform_3, window_bounds = array<i64: 32, 8>}]} {
    %c0 = arith.constant 0 : index
    %c0_0 = arith.constant 0 : index
    %c0_1 = arith.constant 0 : index
    %c0_2 = arith.constant 0 : index
    %0 = vector.load %arg1[%c0, %c0_0, %c0_1, %c0_2] : memref<4x2x8x8xf32, #tpu.memory_space<vmem>>, vector<4x1x8x8xf32>
    %1 = vector.shape_cast %0 : vector<4x1x8x8xf32> to vector<4x8x8xf32>
    %2 = vector.shape_cast %1 : vector<4x8x8xf32> to vector<32x8xf32>
    %c0_3 = arith.constant 0 : index
    %c1 = arith.constant 1 : index
    %c0_4 = arith.constant 0 : index
    %c0_5 = arith.constant 0 : index
    %3 = vector.load %arg1[%c0_3, %c1, %c0_4, %c0_5] : memref<4x2x8x8xf32, #tpu.memory_space<vmem>>, vector<4x1x8x8xf32>
    %4 = vector.shape_cast %3 : vector<4x1x8x8xf32> to vector<4x8x8xf32>
    %5 = vector.shape_cast %4 : vector<4x8x8xf32> to vector<32x8xf32>
    %c0_6 = arith.constant 0 : index
    %c0_7 = arith.constant 0 : index
    %6 = vector.load %arg2[%c0_6, %c0_7] : memref<8x8xf32, #tpu.memory_space<vmem>>, vector<8x8xf32>
    %c0_8 = arith.constant 0 : index
    %c0_9 = arith.constant 0 : index
    %7 = vector.load %arg3[%c0_8, %c0_9] : memref<1x8xf32, #tpu.memory_space<vmem>>, vector<1x8xf32>
    %cst = arith.constant dense<0.000000e+00> : vector<32x8xf32>
    %8 = tpu.matmul %2, %6, %cst {dimension_numbers = #tpu.dot_dimension_numbers<[1], [0], [0], [1], [0, 0, 1, 1], [], []>} : vector<32x8xf32>, vector<8x8xf32>, vector<32x8xf32> -> vector<32x8xf32>
    %cst_10 = arith.constant dense<0.000000e+00> : vector<32x8xf32>
    %9 = tpu.matmul %5, %6, %cst_10 {dimension_numbers = #tpu.dot_dimension_numbers<[1], [0], [0], [1], [0, 0, 1, 1], [], []>} : vector<32x8xf32>, vector<8x8xf32>, vector<32x8xf32> -> vector<32x8xf32>
    %10 = arith.addf %8, %9 : vector<32x8xf32>
    %11 = vector.broadcast %7 : vector<1x8xf32> to vector<32x8xf32>
    %12 = arith.addf %10, %11 : vector<32x8xf32>
    %c0_11 = arith.constant 0 : index
    %c0_12 = arith.constant 0 : index
    %13 = vector.load %arg4[%c0_11, %c0_12] : memref<32x8xf32, #tpu.memory_space<vmem>>, vector<32x8xf32>
    tpu.vector_store %arg4[%c0_11, %c0_12], %12 {strides = array<i32>} : memref<32x8xf32, #tpu.memory_space<vmem>>, vector<32x8xf32>,
    return
  }
  func.func @transform_0(%arg0: i32) -> (i32, i32, i32, i32) {
    %c0_i32 = arith.constant 0 : i32
    %c0_i32_0 = arith.constant 0 : i32
    %c0_i32_1 = arith.constant 0 : i32
    %c0_i32_2 = arith.constant 0 : i32
    return %arg0, %c0_i32, %c0_i32_0, %c0_i32_1 : i32, i32, i32, i32
  }
  func.func @transform_1(%arg0: i32) -> (i32, i32) {
    %c0_i32 = arith.constant 0 : i32
    %c0_i32_0 = arith.constant 0 : i32
    %c0_i32_1 = arith.constant 0 : i32
    return %c0_i32, %c0_i32_0 : i32, i32
  }
  func.func @transform_2(%arg0: i32) -> (i32, i32) {
    %c0_i32 = arith.constant 0 : i32
    %c0_i32_0 = arith.constant 0 : i32
    %c0_i32_1 = arith.constant 0 : i32
    return %c0_i32, %c0_i32_0 : i32, i32
  }
  func.func @transform_3(%arg0: i32) -> (i32, i32) {
    %c0_i32 = arith.constant 0 : i32
    %c0_i32_0 = arith.constant 0 : i32
    return %arg0, %c0_i32 : i32, i32
  }
}

</mosaic_0001>

<llo_original>
// kernel: tpu_custom_call.1
$region0: #{tpu_custom_call.1}
  #allocation0 [shape = 'u32[]', space=smem, size = 0x4, offset = 0x4, fixed_abs, tag = 'smem constant byte address 0x4 - core index']
  #allocation1 [shape = 'u32[144,128]{1,0:T(1,128)}', space=vmem, size = 0x12000, scoped, tag = 'internal scratch']
  %s0 = inlined_call_operand.vmem [shape: f32[16,2,8,8], index: 0, kind: input, shape index: {}]
  %s1 = inlined_call_operand.vmem [shape: f32[8,8], index: 1, kind: input, shape index: {}]
  %s2 = inlined_call_operand.vmem [shape: f32[1,8], index: 2, kind: input, shape index: {}]
  %s3 = inlined_call_operand.vmem [shape: f32[128,8], index: 3, kind: output, shape index: {}]
  %s4 = sld [smem:[#allocation0]]
  $region45: #{tpu_custom_call.1} parent=0
    _
  %s6 = ssub.s32 1, %s4
  %s7 = scalar_select 0, %s6, %s4
  loop: start=0, step=1, limit=6
  $region2: #{tpu_custom_call.1} parent=0 // loop_pre_header
    _
  $region3: #{tpu_custom_call.1} parent=0 // loop_header
    %s9 = sphi 0, %s13
    %p10 = scmp.ge.s32.totalorder %s9, 6
    %s19 = sphi 0, %s21
    %s22 = sphi 0, %s19
    %s23 = sphi 0, %s22
    %s39 = sphi 0, %s23
    %s43 = sphi 0, %s43
    %s45 = sphi 0, %s43
    %s46 = sphi 0, %s45
    %s60 = sphi 0, %s46
    %s64 = sphi 0, %s64
    %s66 = sphi 0, %s64
    %s67 = sphi 0, %s66
    %s81 = sphi 0, %s67
    %s87 = sphi 0, %s89
    %s90 = sphi 0, %s87
    %s91 = sphi 0, %s90
    %s107 = sphi 0, %s91
  $region4: #{tpu_custom_call.1} parent=0 // loop_header_branch
    %12 = sbr.rel (%p10) target = $region8
  $region5: #{tpu_custom_call.1} parent=0 // loop_body
    %s14 = ssub.s32 %s9, 1
    %s15 = ssub.s32 %s9, 2
    %s16 = sadd.s32 %s9, 1
    %s17 = ssub.s32 %s9, %s16
    %p18 = scmp.eq.s32.totalorder %s17, 0
    %s20 = sadd.s32 %s19, 1
    %s21 = scalar_select %p18, %s19, %s20
    %p24 = pneg %p18
    %p25 = scmp.eq.s32.totalorder %s9, 3
    %p26 = por %p24, %p25
    %p27 = scmp.ne.s32.totalorder %s19, %s22
    %p28 = scmp.eq.s32.totalorder %s9, 0
    %p29 = por %p27, %p28
    %p30 = scmp.ne.s32.totalorder %s19, %s22
    %p31 = scmp.eq.s32.totalorder %s14, 3
    %p32 = por %p30, %p31
    %p33 = scmp.ne.s32.totalorder %s22, %s23
    %p34 = scmp.eq.s32.totalorder %s14, 0
    %p35 = por %p33, %p34
    %p36 = scmp.ne.s32.totalorder %s22, %s23
    %p37 = scmp.eq.s32.totalorder %s15, 3
    %p38 = por %p36, %p37
    %p40 = scmp.ne.s32.totalorder %s23, %s39
    %p41 = scmp.eq.s32.totalorder %s15, 0
    %p42 = por %p40, %p41
    %s44 = sadd.s32 %s43, 1
    %p47 = scmp.eq.s32.totalorder %s9, 3
    %p48 = scmp.ne.s32.totalorder %s43, %s45
    %p49 = scmp.eq.s32.totalorder %s9, 0
    %p50 = por %p48, %p49
    %p51 = scmp.ne.s32.totalorder %s43, %s45
    %p52 = scmp.eq.s32.totalorder %s14, 3
    %p53 = por %p51, %p52
    %p54 = scmp.ne.s32.totalorder %s45, %s46
    %p55 = scmp.eq.s32.totalorder %s14, 0
    %p56 = por %p54, %p55
    %p57 = scmp.ne.s32.totalorder %s45, %s46
    %p58 = scmp.eq.s32.totalorder %s15, 3
    %p59 = por %p57, %p58
    %p61 = scmp.ne.s32.totalorder %s46, %s60
    %p62 = scmp.eq.s32.totalorder %s15, 0
    %p63 = por %p61, %p62
    %s65 = sadd.s32 %s64, 1
    %p68 = scmp.eq.s32.totalorder %s9, 3
    %p69 = scmp.ne.s32.totalorder %s64, %s66
    %p70 = scmp.eq.s32.totalorder %s9, 0
    %p71 = por %p69, %p70
    %p72 = scmp.ne.s32.totalorder %s64, %s66
    %p73 = scmp.eq.s32.totalorder %s14, 3
    %p74 = por %p72, %p73
    %p75 = scmp.ne.s32.totalorder %s66, %s67
    %p76 = scmp.eq.s32.totalorder %s14, 0
    %p77 = por %p75, %p76
    %p78 = scmp.ne.s32.totalorder %s66, %s67
    %p79 = scmp.eq.s32.totalorder %s15, 3
    %p80 = por %p78, %p79
    %p82 = scmp.ne.s32.totalorder %s67, %s81
    %p83 = scmp.eq.s32.totalorder %s15, 0
    %p84 = por %p82, %p83
    %s85 = ssub.s32 %s9, %s16
    %p86 = scmp.eq.s32.totalorder %s85, 0
    %s88 = sadd.s32 %s87, 1
    %s89 = scalar_select %p86, %s87, %s88
    %p92 = pneg %p86
    %p93 = scmp.eq.s32.totalorder %s9, 3
    %p94 = por %p92, %p93
    %p95 = scmp.ne.s32.totalorder %s87, %s90
    %p96 = scmp.eq.s32.totalorder %s9, 0
    %p97 = por %p95, %p96
    %p98 = scmp.ne.s32.totalorder %s87, %s90
    %p99 = scmp.eq.s32.totalorder %s14, 3
    %p100 = por %p98, %p99
    %p101 = scmp.ne.s32.totalorder %s90, %s91
    %p102 = scmp.eq.s32.totalorder %s14, 0
    %p103 = por %p101, %p102
    %p104 = scmp.ne.s32.totalorder %s90, %s91
    %p105 = scmp.eq.s32.totalorder %s15, 3
    %p106 = por %p104, %p105
    %p108 = scmp.ne.s32.totalorder %s91, %s107
    %p109 = scmp.eq.s32.totalorder %s15, 0
    %p110 = por %p108, %p109
    %p111 = scmp.le.s32.totalorder 1, %s9
    %p112 = scmp.lt.s32.totalorder %s9, 5
    %p113 = pnand %p111, %p112
    %p114 = pneg %p113
    // Predicated region
    $region9: #{tpu_custom_call.1} parent=5 // pred_check
      _
    $region10: #{tpu_custom_call.1} parent=5 // pred_check_branch
      %116 = sbr.rel (%p113) target = $region12
    $region11: #{tpu_custom_call.1} parent=5 // pred_region
      %s117 = ssub.s32 %s9, 1
      // Predicated region
      $region13: #{tpu_custom_call.1} parent=11 // pred_check
        %p118 = pneg %p56
      $region14: #{tpu_custom_call.1} parent=11 // pred_check_branch
        %120 = sbr.rel (%p118) target = $region16
      $region15: #{tpu_custom_call.1} parent=11 // pred_region
        _
      $region16: #{tpu_custom_call.1} parent=11 // pred_fallthru
        _
      // Predicated region
      $region17: #{tpu_custom_call.1} parent=11 // pred_check
        %p121 = pneg %p77
      $region18: #{tpu_custom_call.1} parent=11 // pred_check_branch
        %123 = sbr.rel (%p121) target = $region20
      $region19: #{tpu_custom_call.1} parent=11 // pred_region
        _
      $region20: #{tpu_custom_call.1} parent=11 // pred_fallthru
        _
    $region12: #{tpu_custom_call.1} parent=5 // pred_fallthru
      _
    %p124 = scmp.lt.s32.totalorder %s9, 4
    // Predicated region
    $region21: #{tpu_custom_call.1} parent=5 // pred_check
      %p125 = pneg %p124
    $region22: #{tpu_custom_call.1} parent=5 // pred_check_branch
      %127 = sbr.rel (%p125) target = $region24
    $region23: #{tpu_custom_call.1} parent=5 // pred_region
      // Predicated region
      $region25: #{tpu_custom_call.1} parent=23 // pred_check
        %p128 = pneg %p29
      $region26: #{tpu_custom_call.1} parent=23 // pred_check_branch
        %130 = sbr.rel (%p128) target = $region28
      $region27: #{tpu_custom_call.1} parent=23 // pred_region
        %s131 = smul.u32 4, %s9
        %p132 = scmp.lt.s32.totalorder %s131, 15
        %s133 = scalar_select %p132, %s131, 15
        %s134 = smul.addr %s133, 2
        %s135 = smul.addr %s134, 8
        %s136 = scalar_lea.vmem %s0, %s135
        %s137 = smul.u32 4, %s9
      $region28: #{tpu_custom_call.1} parent=23 // pred_fallthru
        _
    $region24: #{tpu_custom_call.1} parent=5 // pred_fallthru
      _
    %p138 = scmp.le.s32.totalorder 1, %s9
    %p139 = scmp.lt.s32.totalorder %s9, 5
    %p140 = pnand %p138, %p139
    %p141 = pneg %p140
    // Predicated region
    $region29: #{tpu_custom_call.1} parent=5 // pred_check
      _
    $region30: #{tpu_custom_call.1} parent=5 // pred_check_branch
      %143 = sbr.rel (%p140) target = $region32
    $region31: #{tpu_custom_call.1} parent=5 // pred_region
      %s144 = ssub.s32 %s9, 1
      %s145 = smul.u32 4, %s14
      %p146 = scmp.lt.s32.totalorder %s145, 15
      %s147 = scalar_select %p146, %s145, 15
      %s148 = smul.addr %s147, 2
      %s149 = smul.addr %s148, 8
      %s150 = scalar_lea.vmem %s0, %s149
      %p151 = pneg %p35
      %p152 = pneg %p32
      %p153 = pneg %p56
      %p154 = pneg %p53
      %p155 = pneg %p77
      %p156 = pneg %p74
      %p157 = pneg %p103
      %p158 = pneg %p100
      %s159 = smul.u32 4, %s14
      %p160 = scmp.lt.s32.totalorder %s159, 15
      %s161 = scalar_select %p160, %s159, 15
      %s162 = smul.addr %s161, 8
      %s163 = scalar_lea.vmem %s3, %s162
      %s164 = smul.u32 4, %s14
      %p165 = scmp.lt.s32.totalorder %s164, 15
      %s166 = scalar_select %p165, %s164, 15
      %s167 = smul.addr %s166, 2
      %s168 = smul.addr %s167, 8
      %s169 = scalar_lea.vmem %s0, %s168
      %s170 = smul.u32 4, %s14
      %s171 = smul.u32 4, %s14
      %p172 = scmp.lt.s32.totalorder %s171, 15
      %s173 = scalar_select %p172, %s171, 15
      %s174 = smul.addr %s173, 8
      %s175 = scalar_lea.vmem %s3, %s174
      %s176 = smul.u32 4, %s14
      %v177 = vld [vmem:[%s169] sm:$0xff]
      %v178 = vld [vmem:[%s169 + $0x10] sm:$0xff]
      %v179 = vld [vmem:[%s169 + $0x20] sm:$0xff]
      %v180 = vld [vmem:[%s169 + $0x30] sm:$0xff]
      %s181 = scalar_lea.vmem %s169, 8
      %v182 = vld [vmem:[%s181] sm:$0xff]
      %v183 = vld [vmem:[%s181 + $0x10] sm:$0xff]
      %v184 = vld [vmem:[%s181 + $0x20] sm:$0xff]
      %v185 = vld [vmem:[%s181 + $0x30] sm:$0xff]
      %v186 = vld [vmem:[%s1] sm:$0xff]
      %v187 = vld [vmem:[%s2] sm:$0x1]
      %vm188 = vcmask 64512
      %v190 = vsel %vm188, %v182, 0
      %v193 = vsel %vm188, %v183, 0
      %v196 = vsel %vm188, %v184, 0
      %v199 = vsel %vm188, %v185, 0
      %201 = vmatprep.subr.mxu0 0.0
      %202 = vmatpush1.msra.mxu0 %v186
      %203 = vmatprep.subr.mxu0 0.0
      %204 = vmatpush1.msra.mxu0 0.0
      %205 = vmatprep.subr.mxu0 0.0
      %206 = vmatpush1.msra.mxu0 0.0
      %207 = vmatprep.subr.mxu0 0.0
      %208 = vmatpush1.msra.mxu0 0.0
      %209 = vmatprep.subr.mxu0 0.0
      %210 = vmatpush1.msra.mxu0 0.0
      %211 = vmatprep.subr.mxu0 0.0
      %212 = vmatpush1.msra.mxu0 0.0
      %213 = vmatprep.subr.mxu0 0.0
      %214 = vmatpush1.msra.mxu0 0.0
      %215 = vmatprep.subr.mxu0 0.0
      %216 = vmatpush1.msra.mxu0 0.0
      %217 = vmatprep.subr.mxu0 0.0
      %218 = vmatpush1.msra.mxu0 0.0
      %219 = vmatprep.subr.mxu0 0.0
      %220 = vmatpush1.msra.mxu0 0.0
      %221 = vmatprep.subr.mxu0 0.0
      %222 = vmatpush1.msra.mxu0 0.0
      %223 = vmatprep.subr.mxu0 0.0
      %224 = vmatpush1.msra.mxu0 0.0
      %225 = vmatprep.subr.mxu0 0.0
      %226 = vmatpush1.msra.mxu0 0.0
      %227 = vmatprep.subr.mxu0 0.0
      %228 = vmatpush1.msra.mxu0 0.0
      %229 = vmatprep.subr.mxu0 0.0
      %230 = vmatpush1.msra.mxu0 0.0
      %231 = vmatprep.subr.mxu0 0.0
      %232 = vmatpush1.msra.mxu0 0.0
      %233 = vmatprep.subr.mxu0 0.0
      %234 = vmatpush1.msra.mxu0 0.0
      %235 = vmatprep.subr.mxu0 0.0
      %236 = vmatpush1.msra.mxu0 0.0
      %237 = vmatprep.subr.mxu0 0.0
      %238 = vmatpush1.msra.mxu0 0.0
      %239 = vmatprep.subr.mxu0 0.0
      %240 = vmatpush1.msra.mxu0 0.0
      %241 = vmatprep.subr.mxu0 0.0
      %242 = vmatpush1.msra.mxu0 0.0
      %243 = vmatprep.subr.mxu0 0.0
      %244 = vmatpush1.msra.mxu0 0.0
      %245 = vmatprep.subr.mxu0 0.0
      %246 = vmatpush1.msra.mxu0 0.0
      %247 = vmatprep.subr.mxu0 0.0
      %248 = vmatpush1.msra.mxu0 0.0
      %249 = vmatprep.subr.mxu0 0.0
      %250 = vmatpush1.msra.mxu0 0.0
      %251 = vmatprep.subr.mxu0 0.0
      %252 = vmatpush1.msra.mxu0 0.0
      %253 = vmatprep.subr.mxu0 0.0
      %254 = vmatpush1.msra.mxu0 0.0
      %255 = vmatprep.subr.mxu0 0.0
      %256 = vmatpush1.msra.mxu0 0.0
      %257 = vmatprep.subr.mxu0 0.0
      %258 = vmatpush1.msra.mxu0 0.0
      %259 = vmatprep.subr.mxu0 0.0
      %260 = vmatpush1.msra.mxu0 0.0
      %261 = vmatprep.subr.mxu0 0.0
      %262 = vmatpush1.msra.mxu0 0.0
      %263 = vmatprep.subr.mxu0 0.0
      %264 = vmatpush1.msra.mxu0 0.0
      %265 = vmatprep.mubr.f32.mxu0 0.0
      %266 = vmatmul.mubr.f32.gmra.mrb[0].mxu0 %v190
      %v267 = vpop.f32.mrb[0].mxu0
      %v268 = vadd.f32 0.0, %v267
      %v269 = vpop.f32.mrb[0].mxu0
      %270 = vmatprep.mubr.f32.mxu0 0.0
      %271 = vmatmul.mubr.f32.gmra.mrb[0].mxu0 %v193
      %v272 = vpop.f32.mrb[0].mxu0
      %v273 = vadd.f32 0.0, %v272
      %v274 = vpop.f32.mrb[0].mxu0
      %275 = vmatprep.mubr.f32.mxu0 0.0
      %276 = vmatmul.mubr.f32.gmra.mrb[0].mxu0 %v196
      %v277 = vpop.f32.mrb[0].mxu0
      %v278 = vadd.f32 0.0, %v277
      %v279 = vpop.f32.mrb[0].mxu0
      %280 = vmatprep.mubr.f32.mxu0 0.0
      %281 = vmatmul.mubr.f32.gmra.mrb[0].mxu0 %v199
      %v282 = vpop.f32.mrb[0].mxu0
      %v283 = vadd.f32 0.0, %v282
      %v284 = vpop.f32.mrb[0].mxu0
      %285 = vdwg.mxu0
      %v287 = vsel %vm188, %v177, 0
      %v290 = vsel %vm188, %v178, 0
      %v293 = vsel %vm188, %v179, 0
      %v296 = vsel %vm188, %v180, 0
      %298 = vmatprep.subr.mxu0 0.0
      %299 = vmatpush1.msra.mxu0 %v186
      %300 = vmatprep.subr.mxu0 0.0
      %301 = vmatpush1.msra.mxu0 0.0
      %302 = vmatprep.subr.mxu0 0.0
      %303 = vmatpush1.msra.mxu0 0.0
      %304 = vmatprep.subr.mxu0 0.0
      %305 = vmatpush1.msra.mxu0 0.0
      %306 = vmatprep.subr.mxu0 0.0
      %307 = vmatpush1.msra.mxu0 0.0
      %308 = vmatprep.subr.mxu0 0.0
      %309 = vmatpush1.msra.mxu0 0.0
      %310 = vmatprep.subr.mxu0 0.0
      %311 = vmatpush1.msra.mxu0 0.0
      %312 = vmatprep.subr.mxu0 0.0
      %313 = vmatpush1.msra.mxu0 0.0
      %314 = vmatprep.subr.mxu0 0.0
      %315 = vmatpush1.msra.mxu0 0.0
      %316 = vmatprep.subr.mxu0 0.0
      %317 = vmatpush1.msra.mxu0 0.0
      %318 = vmatprep.subr.mxu0 0.0
      %319 = vmatpush1.msra.mxu0 0.0
      %320 = vmatprep.subr.mxu0 0.0
      %321 = vmatpush1.msra.mxu0 0.0
      %322 = vmatprep.subr.mxu0 0.0
      %323 = vmatpush1.msra.mxu0 0.0
      %324 = vmatprep.subr.mxu0 0.0
      %325 = vmatpush1.msra.mxu0 0.0
      %326 = vmatprep.subr.mxu0 0.0
      %327 = vmatpush1.msra.mxu0 0.0
      %328 = vmatprep.subr.mxu0 0.0
      %329 = vmatpush1.msra.mxu0 0.0
      %330 = vmatprep.subr.mxu0 0.0
      %331 = vmatpush1.msra.mxu0 0.0
      %332 = vmatprep.subr.mxu0 0.0
      %333 = vmatpush1.msra.mxu0 0.0
      %334 = vmatprep.subr.mxu0 0.0
      %335 = vmatpush1.msra.mxu0 0.0
      %336 = vmatprep.subr.mxu0 0.0
      %337 = vmatpush1.msra.mxu0 0.0
      %338 = vmatprep.subr.mxu0 0.0
      %339 = vmatpush1.msra.mxu0 0.0
      %340 = vmatprep.subr.mxu0 0.0
      %341 = vmatpush1.msra.mxu0 0.0
      %342 = vmatprep.subr.mxu0 0.0
      %343 = vmatpush1.msra.mxu0 0.0
      %344 = vmatprep.subr.mxu0 0.0
      %345 = vmatpush1.msra.mxu0 0.0
      %346 = vmatprep.subr.mxu0 0.0
      %347 = vmatpush1.msra.mxu0 0.0
      %348 = vmatprep.subr.mxu0 0.0
      %349 = vmatpush1.msra.mxu0 0.0
      %350 = vmatprep.subr.mxu0 0.0
      %351 = vmatpush1.msra.mxu0 0.0
      %352 = vmatprep.subr.mxu0 0.0
      %353 = vmatpush1.msra.mxu0 0.0
      %354 = vmatprep.subr.mxu0 0.0
      %355 = vmatpush1.msra.mxu0 0.0
      %356 = vmatprep.subr.mxu0 0.0
      %357 = vmatpush1.msra.mxu0 0.0
      %358 = vmatprep.subr.mxu0 0.0
      %359 = vmatpush1.msra.mxu0 0.0
      %360 = vmatprep.subr.mxu0 0.0
      %361 = vmatpush1.msra.mxu0 0.0
      %362 = vmatprep.mubr.f32.mxu0 0.0
      %363 = vmatmul.mubr.f32.gmra.mrb[0].mxu0 %v287
      %v364 = vpop.f32.mrb[0].mxu0
      %v365 = vadd.f32 %v268, %v364
      %v366 = vpop.f32.mrb[0].mxu0
      %367 = vmatprep.mubr.f32.mxu0 0.0
      %368 = vmatmul.mubr.f32.gmra.mrb[0].mxu0 %v290
      %v369 = vpop.f32.mrb[0].mxu0
      %v370 = vadd.f32 %v273, %v369
      %v371 = vpop.f32.mrb[0].mxu0
      %372 = vmatprep.mubr.f32.mxu0 0.0
      %373 = vmatmul.mubr.f32.gmra.mrb[0].mxu0 %v293
      %v374 = vpop.f32.mrb[0].mxu0
      %v375 = vadd.f32 %v278, %v374
      %v376 = vpop.f32.mrb[0].mxu0
      %377 = vmatprep.mubr.f32.mxu0 0.0
      %378 = vmatmul.mubr.f32.gmra.mrb[0].mxu0 %v296
      %v379 = vpop.f32.mrb[0].mxu0
      %v380 = vadd.f32 %v283, %v379
      %v381 = vpop.f32.mrb[0].mxu0
      %382 = vdwg.mxu0
      %v384 = vlaneseq
      %v385 = vshrl.u32 %v384, 7
      %v386 = vsub.s32 0, %v385
      %v387 = vrot.slane %v187, %v386
      %v389 = vadd.f32 %v365, %v387
      %v390 = vadd.f32 %v370, %v387
      %v391 = vadd.f32 %v375, %v387
      %v392 = vadd.f32 %v380, %v387
      %393 = vst.msk [vmem:[%s175] sm:$0xff] %vm188, %v389
      %394 = vst.msk [vmem:[%s175 + $0x8] sm:$0xff] %vm188, %v390
      %395 = vst.msk [vmem:[%s175 + $0x10] sm:$0xff] %vm188, %v391
      %396 = vst.msk [vmem:[%s175 + $0x18] sm:$0xff] %vm188, %v392
      %s397 = smul.u32 4, %s14
      %p398 = scmp.lt.s32.totalorder %s397, 15
      %s399 = scalar_select %p398, %s397, 15
      %s400 = smul.addr %s399, 8
      %s401 = scalar_lea.vmem %s3, %s400
      // Predicated region
      $region33: #{tpu_custom_call.1} parent=31 // pred_check
        %p402 = pneg %p100
      $region34: #{tpu_custom_call.1} parent=31 // pred_check_branch
        %404 = sbr.rel (%p402) target = $region36
      $region35: #{tpu_custom_call.1} parent=31 // pred_region
        %s405 = smul.u32 4, %s14
      $region36: #{tpu_custom_call.1} parent=31 // pred_fallthru
        _
    $region32: #{tpu_custom_call.1} parent=5 // pred_fallthru
      _
    %p406 = scmp.le.s32.totalorder 2, %s9
    // Predicated region
    $region37: #{tpu_custom_call.1} parent=5 // pred_check
      %p407 = pneg %p406
    $region38: #{tpu_custom_call.1} parent=5 // pred_check_branch
      %409 = sbr.rel (%p407) target = $region40
    $region39: #{tpu_custom_call.1} parent=5 // pred_region
      %s410 = ssub.s32 %s9, 2
      // Predicated region
      $region41: #{tpu_custom_call.1} parent=39 // pred_check
        %p411 = pneg %p106
      $region42: #{tpu_custom_call.1} parent=39 // pred_check_branch
        %413 = sbr.rel (%p411) target = $region44
      $region43: #{tpu_custom_call.1} parent=39 // pred_region
        %s414 = smul.u32 4, %s15
        %p415 = scmp.lt.s32.totalorder %s414, 15
        %s416 = scalar_select %p415, %s414, 15
        %s417 = smul.addr %s416, 8
        %s418 = scalar_lea.vmem %s3, %s417
      $region44: #{tpu_custom_call.1} parent=39 // pred_fallthru
        _
    $region40: #{tpu_custom_call.1} parent=5 // pred_fallthru
      _
  $region6: #{tpu_custom_call.1} parent=0 // loop_footer
    %s13 = sadd.s32 1, %s9
  $region7: #{tpu_custom_call.1} parent=0 // loop_footer_branch
    %8 = sbr.rel target = $region3
  $region8: #{tpu_custom_call.1} parent=0 // loop_exit
    _

</llo_original>
